<compile_context>
chip_gen: v6e
topology: v6e:2x2x1
jax: 0.10.0
libtpu: 0.0.40
codegen_flags: <defaults>
</compile_context>

<pallas_src>
import jax
import jax.numpy as jnp
from jax.experimental import pallas as pl
from jax.experimental.pallas import tpu as pltpu

_LANE = 128
_MIN_GROUPS = 8                     # >= 8 sublanes per block (sublane-dense)
_DEFAULT_BLOCK_ROWS = 512 * 1024    # ~6 MiB of f32 traffic per grid step (K=2,N=1)
_PALLAS_MIN_ROWS = 1024             # below this, launch overhead dominates


def _cdiv(a, b):
    return (a + b - 1) // b


def _round_up(n, m):
    return _cdiv(n, m) * m


def _make_linear_kernel(K, N):
    """y = x @ W^T + b computed from the feature-interleaved flat layout.

    x_ref row r holds the K features of 128 consecutive batch rows interleaved
    on the lane axis; a structured (128K, 128N) gather matrix (built from the
    SMEM weight scalars) de-interleaves and reduces them on the MXU.
    """

    def kernel(w_ref, b_ref, x_ref, o_ref):
        # w_ref: (N*K,) f32 SMEM (PyTorch nn.Linear weight, row-major)
        # b_ref: (N,)   f32 SMEM
        # x_ref: (tR, 128*K) VMEM  (feature-interleaved rows of 128 batch rows)
        # o_ref: (tR, 128*N) f32 VMEM (flat row-major y)
        kc, nc = _LANE * K, _LANE * N
        row = jax.lax.broadcasted_iota(jnp.int32, (kc, nc), 0)   # input lane
        col = jax.lax.broadcasted_iota(jnp.int32, (kc, nc), 1)   # output lane
        j = col if N == 1 else col // N                           # batch-in-group

        # Tiny constant build (~32*K*N vregs of VPU work): negligible per step.
        gather = jnp.zeros((kc, nc), jnp.float32)
        for n in range(N):
            for k in range(K):
                sel = row == (K * j + k)
                if N > 1:
                    sel = sel & ((col % N) == n)
                gather = gather + jnp.where(sel, w_ref[n * K + k], 0.0)

        y = jnp.dot(x_ref[...].astype(jnp.float32), gather,
                    preferred_element_type=jnp.float32,
                    precision=jax.lax.Precision.HIGHEST)

        if N == 1:
            o_ref[...] = y + b_ref[0]
        else:
            ocol = jax.lax.broadcasted_iota(jnp.int32, (1, nc), 1)
            bias_row = jnp.zeros((1, nc), jnp.float32)
            for n in range(N):
                bias_row = bias_row + jnp.where((ocol % N) == n, b_ref[n], 0.0)
            o_ref[...] = y + bias_row

    return kernel


def linear_forward_pallas(x, weight, bias, *, block_rows=_DEFAULT_BLOCK_ROWS):
    """y = x @ W^T + b.  x: (B, K) [f32 or bf16], weight: (N, K), bias: (N,)."""
    B, K = x.shape
    N = weight.shape[0]

    if x.dtype not in (jnp.float32, jnp.bfloat16):
        x = x.astype(jnp.float32)   # bf16 inputs are kept (upcast in-kernel)

    # Pad batch only to a multiple of 128 (and >= 8 groups).  For 128-aligned
    # batches >= 1024 rows this (and the output slice below) is a no-op.
    Bp = max(_MIN_GROUPS * _LANE, _round_up(B, _LANE))
    if Bp != B:
        x = jnp.pad(x, ((0, Bp - B), (0, 0)))
    Rp = Bp // _LANE                              # number of 128-row groups

    # Free row-major view: features of 128 consecutive rows interleaved on lanes.
    x_rows = x.reshape(Rp, _LANE * K)

    # Batch-group tile: multiple of 8 groups (sublane-dense), large for HBM
    # bandwidth, but capped so there are ~8 grid steps (v7x 2-TC sharding).
    tR_cfg = max(_MIN_GROUPS, _round_up(_cdiv(max(block_rows, _LANE), _LANE),
                                        _MIN_GROUPS))
    tR_split = _round_up(_cdiv(Rp, 8), _MIN_GROUPS)
    tR = max(_MIN_GROUPS, min(tR_cfg, tR_split, _round_up(Rp, _MIN_GROUPS)))
    grid = (_cdiv(Rp, tR),)                       # partial last block is masked

    out = pl.pallas_call(
        _make_linear_kernel(K, N),
        out_shape=jax.ShapeDtypeStruct((Rp, _LANE * N), jnp.float32),
        grid=grid,
        in_specs=[
            pl.BlockSpec(memory_space=pltpu.MemorySpace.SMEM),   # weight (N*K,)
            pl.BlockSpec(memory_space=pltpu.MemorySpace.SMEM),   # bias   (N,)
            pl.BlockSpec((tR, _LANE * K), lambda i: (i, 0)),     # x rows
        ],
        out_specs=pl.BlockSpec((tR, _LANE * N), lambda i: (i, 0)),
        compiler_params=pltpu.CompilerParams(
            dimension_semantics=("parallel",),
            vmem_limit_bytes=32 * 1024 * 1024),
    )(weight.astype(jnp.float32).reshape(-1),
      bias.astype(jnp.float32).reshape(-1),
      x_rows)

    # Flat layout is already y[b*N + n]; reshape is free.  The slice only
    # copies when B is not a multiple of 128 (or B < 1024).
    y = out.reshape(Bp * N)
    if Bp != B:
        y = y[: B * N]
    return y.reshape(B, N)


def linear_forward(x, weight, bias, *, block_rows=_DEFAULT_BLOCK_ROWS,
                   force_pallas=False):
    """Dispatch: tiny batches go straight to XLA (kernel is pure overhead there)."""
    if not force_pallas and x.shape[0] < _PALLAS_MIN_ROWS:
        return x.astype(jnp.float32) @ weight.astype(jnp.float32).T + \
            bias.astype(jnp.float32)
    return linear_forward_pallas(x, weight, bias, block_rows=block_rows)


if __name__ == "__main__":
    # Data from the original script (X1, X2 concatenated -> (5, 2) input).
    X1 = jnp.array([3, 4, 5, 6, 2], dtype=jnp.float32).reshape(-1, 1)
    X2 = jnp.array([8, 5, 7, 3, 1], dtype=jnp.float32).reshape(-1, 1)
    X = jnp.concatenate((X1, X2), axis=-1)          # (5, 2)

    input_size = X.shape[1]     # 2
    output_size = 1             # y is (5, 1)

    # Deterministic parameter init mirroring nn.Linear's default
    # uniform(-1/sqrt(in), 1/sqrt(in)) initialization.
    key = jax.random.PRNGKey(0)
    kw, kb, kx = jax.random.split(key, 3)
    bound = 1.0 / jnp.sqrt(jnp.float32(input_size))
    weight = jax.random.uniform(
        kw, (output_size, input_size), jnp.float32, -bound, bound)
    bias = jax.random.uniform(kb, (output_size,), jnp.float32, -bound, bound)

    # 1) The module's own tiny input, forcing the Pallas path (single block).
    out_small = linear_forward(X, weight, bias, force_pallas=True)
    jax.block_until_ready(out_small)
    ref_small = X @ weight.T + bias
    assert out_small.shape == (5, 1)
    assert jnp.allclose(out_small, ref_small, atol=1e-4, rtol=1e-4)

    # 2) Moderate batch that is NOT a multiple of 128, with a small tile so the
    #    multi-step, partial-edge-block, "parallel" grid path is exercised.
    B_big = 4100
    X_big = jax.random.normal(kx, (B_big, input_size), jnp.float32)
    out_big = linear_forward(X_big, weight, bias, force_pallas=True,
                             block_rows=1024)
    jax.block_until_ready(out_big)
    ref_big = X_big @ weight.T + bias
    assert out_big.shape == (B_big, 1)
    assert jnp.allclose(out_big, ref_big, atol=1e-4, rtol=1e-4)

    # 3) bf16 input path (x is NOT cast in the wrapper; upcast happens in-kernel).
    out_bf16 = linear_forward(X_big.astype(jnp.bfloat16), weight, bias,
                              force_pallas=True, block_rows=1024)
    jax.block_until_ready(out_bf16)
    assert out_bf16.shape == (B_big, 1)
    assert jnp.allclose(out_bf16, ref_big, atol=5e-2, rtol=5e-2)

    print("KERNEL_OK")
</pallas_src>

<mosaic_0001>
module attributes {stable_mosaic.version = 11 : i64} {
  func.func @kernel(%arg0: i32, %arg1: memref<2xf32, #tpu.memory_space<smem>>, %arg2: memref<1xf32, #tpu.memory_space<smem>>, %arg3: memref<8x256xf32, #tpu.memory_space<vmem>>, %arg4: memref<8x128xf32, #tpu.memory_space<vmem>>) attributes {dimension_semantics = [#tpu.dimension_semantics<parallel>], iteration_bounds = array<i64: 1>, scalar_prefetch = 0 : i64, scratch_operands = 0 : i64, tpu.core_type = #tpu.core_type<tc>, window_params = [{transform_indices = @transform_0, window_bounds = array<i64: 2>}, {transform_indices = @transform_1, window_bounds = array<i64: 1>}, {transform_indices = @transform_2, window_bounds = array<i64: 8, 256>}, {transform_indices = @transform_3, window_bounds = array<i64: 8, 128>}]} {
    %0 = tpu.iota {dimensions = array<i32: 0>} : vector<256x128xi32>
    %1 = tpu.iota {dimensions = array<i32: 1>} : vector<256x128xi32>
    %cst = arith.constant 0.000000e+00 : f32
    %2 = vector.broadcast %cst : f32 to vector<256x128xf32>
    %c2_i32 = arith.constant 2 : i32
    %3 = vector.broadcast %c2_i32 : i32 to vector<256x128xi32>
    %4 = arith.muli %3, %1 : vector<256x128xi32>
    %c0_i32 = arith.constant 0 : i32
    %5 = vector.broadcast %c0_i32 : i32 to vector<256x128xi32>
    %6 = arith.addi %4, %5 : vector<256x128xi32>
    %7 = arith.cmpi eq, %0, %6 : vector<256x128xi32>
    %c0 = arith.constant 0 : index
    %8 = memref.load %arg1[%c0] : memref<2xf32, #tpu.memory_space<smem>>
    %cst_0 = arith.constant 0.000000e+00 : f32
    %9 = vector.broadcast %8 : f32 to vector<256x128xf32>
    %10 = vector.broadcast %cst_0 : f32 to vector<256x128xf32>
    %11 = arith.select %7, %9, %10 : vector<256x128xi1>, vector<256x128xf32>
    %12 = arith.addf %2, %11 : vector<256x128xf32>
    %c2_i32_1 = arith.constant 2 : i32
    %13 = vector.broadcast %c2_i32_1 : i32 to vector<256x128xi32>
    %14 = arith.muli %13, %1 : vector<256x128xi32>
    %c1_i32 = arith.constant 1 : i32
    %15 = vector.broadcast %c1_i32 : i32 to vector<256x128xi32>
    %16 = arith.addi %14, %15 : vector<256x128xi32>
    %17 = arith.cmpi eq, %0, %16 : vector<256x128xi32>
    %c1 = arith.constant 1 : index
    %18 = memref.load %arg1[%c1] : memref<2xf32, #tpu.memory_space<smem>>
    %cst_2 = arith.constant 0.000000e+00 : f32
    %19 = vector.broadcast %18 : f32 to vector<256x128xf32>
    %20 = vector.broadcast %cst_2 : f32 to vector<256x128xf32>
    %21 = arith.select %17, %19, %20 : vector<256x128xi1>, vector<256x128xf32>
    %22 = arith.addf %12, %21 : vector<256x128xf32>
    %c0_3 = arith.constant 0 : index
    %c0_4 = arith.constant 0 : index
    %23 = vector.load %arg3[%c0_3, %c0_4] : memref<8x256xf32, #tpu.memory_space<vmem>>, vector<8x256xf32>
    %cst_5 = arith.constant dense<0.000000e+00> : vector<8x128xf32>
    %24 = tpu.matmul %23, %22, %cst_5 {dimension_numbers = #tpu.dot_dimension_numbers<[1], [0], [0], [1], [0, 0, 1, 1], [], []>, precision = #tpu.contract_precision<fp32>} : vector<8x256xf32>, vector<256x128xf32>, vector<8x128xf32> -> vector<8x128xf32>
    %c0_6 = arith.constant 0 : index
    %25 = memref.load %arg2[%c0_6] : memref<1xf32, #tpu.memory_space<smem>>
    %26 = vector.broadcast %25 : f32 to vector<8x128xf32>
    %27 = arith.addf %24, %26 : vector<8x128xf32>
    %c0_7 = arith.constant 0 : index
    %c0_8 = arith.constant 0 : index
    %28 = vector.load %arg4[%c0_7, %c0_8] : memref<8x128xf32, #tpu.memory_space<vmem>>, vector<8x128xf32>
    tpu.vector_store %arg4[%c0_7, %c0_8], %27 {strides = array<i32>} : memref<8x128xf32, #tpu.memory_space<vmem>>, vector<8x128xf32>,
    return
  }
  func.func @transform_0(%arg0: i32) -> i32 {
    %c0_i32 = arith.constant 0 : i32
    %c0_i32_0 = arith.constant 0 : i32
    return %c0_i32 : i32
  }
  func.func @transform_1(%arg0: i32) -> i32 {
    %c0_i32 = arith.constant 0 : i32
    %c0_i32_0 = arith.constant 0 : i32
    return %c0_i32 : i32
  }
  func.func @transform_2(%arg0: i32) -> (i32, i32) {
    %c0_i32 = arith.constant 0 : i32
    %c0_i32_0 = arith.constant 0 : i32
    return %arg0, %c0_i32 : i32, i32
  }
  func.func @transform_3(%arg0: i32) -> (i32, i32) {
    %c0_i32 = arith.constant 0 : i32
    %c0_i32_0 = arith.constant 0 : i32
    return %arg0, %c0_i32 : i32, i32
  }
}

</mosaic_0001>

<llo_original>
// kernel: tpu_custom_call.1
$region0: #{tpu_custom_call.1}
  #allocation0 [shape = 'u32[]', space=smem, size = 0x4, offset = 0x4, fixed_abs, tag = 'smem constant byte address 0x4 - core index']
  #allocation1 [shape = 'u32[144,128]{1,0:T(1,128)}', space=vmem, size = 0x12000, scoped, tag = 'internal scratch']
  #allocation2 [shape = 'f32[1]{0:T(128)S(6)}', space=smem, size = 0x200, scoped, tag = 'scoped memory for tpu_custom_call.1']
  %s0 = inlined_call_operand.vmem [shape: f32[2], index: 0, kind: input, shape index: {}]
  %s1 = inlined_call_operand.<no memory space> [shape: f32[1], index: 1, kind: input, shape index: {}]
  %s2 = inlined_call_operand.hbm [shape: f32[8,256], index: 2, kind: input, shape index: {}]
  %s3 = inlined_call_operand.hbm [shape: f32[8,128], index: 3, kind: output, shape index: {}]
  %s4 = sld [smem:[#allocation0]]
  $region30: #{tpu_custom_call.1} parent=0
    _
  %s6 = ssub.s32 1, %s4
  %s7 = scalar_select 0, %s6, %s4
  %8 = sst [smem:[#allocation2]] %s1
  $region1: #{tpu_custom_call.1} parent=0
    #allocation3 [shape = 'u8[512]{0}', space=smem, size = 0x200, scoped, tag = 'input window, operand 0, single buffered']
    #allocation4 [shape = 's32[1]{0}', space=sflag, size = 0x4, scoped, tag = 'scoped memory for tpu_custom_call.1']
    #allocation5 [shape = 's32[1]{0}', space=sflag, size = 0x4, scoped, tag = 'scoped memory for tpu_custom_call.1']
    #allocation6 [shape = 's32[1]{0}', space=sflag, size = 0x4, scoped, tag = 'scoped memory for tpu_custom_call.1']
    #allocation7 [shape = 'u8[8192]{0}', space=vmem, size = 0x2000, scoped, tag = 'input window, operand 2, single buffered']
    #allocation8 [shape = 'u8[4096]{0}', space=vmem, size = 0x1000, scoped, tag = 'output window, operand 0, single buffered']
    %9 = vsyncpa [#allocation6], 0
    %10 = vsyncpa [#allocation4], 0
    %11 = vsyncpa [#allocation5], 0
    // Predicated region
    $region2: #{tpu_custom_call.1} parent=1 // pred_check
      _
    $region3: #{tpu_custom_call.1} parent=1 // pred_check_branch
      %13 = sbr.rel (0) target = $region5
    $region4: #{tpu_custom_call.1} parent=1 // pred_region
      %s15 = ssub.s32 16, 16
      %16 = vsyncadd [#allocation6], %s15
      %s18 = sshll.u32 %s0, 4
      %s19 = int_to_ptr.vmem [resolvable:$true] %s18
      %21 = dma.vmem_to_smem %s19, 16, [#allocation3], [#allocation6]
    $region5: #{tpu_custom_call.1} parent=1 // pred_fallthru
      _
    // Predicated region
    $region6: #{tpu_custom_call.1} parent=1 // pred_check
      _
    $region7: #{tpu_custom_call.1} parent=1 // pred_check_branch
      %23 = sbr.rel (0) target = $region9
    $region8: #{tpu_custom_call.1} parent=1 // pred_region
      _
    $region9: #{tpu_custom_call.1} parent=1 // pred_fallthru
      _
    // Predicated region
    $region10: #{tpu_custom_call.1} parent=1 // pred_check
      _
    $region11: #{tpu_custom_call.1} parent=1 // pred_check_branch
      %25 = sbr.rel (0) target = $region13
    $region12: #{tpu_custom_call.1} parent=1 // pred_region
      %s27 = ssub.s32 256, 256
      %28 = vsyncadd [#allocation4], %s27
      %s30 = sshll.u32 [#allocation7], 4
      %s31 = int_to_ptr.vmem [resolvable:$true] %s30
      %33 = dma.hbm_to_vmem [thread:$0]  %s2, 256, %s31, [#allocation4]
    $region13: #{tpu_custom_call.1} parent=1 // pred_fallthru
      _
    // Predicated region
    $region14: #{tpu_custom_call.1} parent=1 // pred_check
      _
    $region15: #{tpu_custom_call.1} parent=1 // pred_check_branch
      %35 = sbr.rel (0) target = $region17
    $region16: #{tpu_custom_call.1} parent=1 // pred_region
      %36 = dma.done [#allocation6], 16
    $region17: #{tpu_custom_call.1} parent=1 // pred_fallthru
      _
    // Predicated region
    $region18: #{tpu_custom_call.1} parent=1 // pred_check
      _
    $region19: #{tpu_custom_call.1} parent=1 // pred_check_branch
      %38 = sbr.rel (0) target = $region21
    $region20: #{tpu_custom_call.1} parent=1 // pred_region
      %39 = dma.done [#allocation4], 256
    $region21: #{tpu_custom_call.1} parent=1 // pred_fallthru
      _
    %40 = sfence
    %v41 = vlaneseq
    %v42 = vshrl.u32 %v41, 7
    %v43 = vadd.s32 %v42, 8
    %v44 = vadd.s32 %v42, 16
    %v45 = vadd.s32 %v42, 24
    %v46 = vadd.s32 %v42, 32
    %v47 = vadd.s32 %v42, 40
    %v48 = vadd.s32 %v42, 48
    %v49 = vadd.s32 %v42, 56
    %v50 = vadd.s32 %v42, 64
    %v51 = vadd.s32 %v42, 72
    %v52 = vadd.s32 %v42, 80
    %v53 = vadd.s32 %v42, 88
    %v54 = vadd.s32 %v42, 96
    %v55 = vadd.s32 %v42, 104
    %v56 = vadd.s32 %v42, 112
    %v57 = vadd.s32 %v42, 120
    %v58 = vadd.s32 %v42, 128
    %v59 = vadd.s32 %v42, 136
    %v60 = vadd.s32 %v42, 144
    %v61 = vadd.s32 %v42, 152
    %v62 = vadd.s32 %v42, 160
    %v63 = vadd.s32 %v42, 168
    %v64 = vadd.s32 %v42, 176
    %v65 = vadd.s32 %v42, 184
    %v66 = vadd.s32 %v42, 192
    %v67 = vadd.s32 %v42, 200
    %v68 = vadd.s32 %v42, 208
    %v69 = vadd.s32 %v42, 216
    %v70 = vadd.s32 %v42, 224
    %v71 = vadd.s32 %v42, 232
    %v72 = vadd.s32 %v42, 240
    %v73 = vadd.s32 %v42, 248
    %v74 = vlaneseq
    %v75 = vand.u32 %v74, 127
    %v76 = vmul.u32 %v75, 2
    %vm77 = vcmp.eq.s32.totalorder %v42, %v76
    %vm78 = vcmp.eq.s32.totalorder %v43, %v76
    %vm79 = vcmp.eq.s32.totalorder %v44, %v76
    %vm80 = vcmp.eq.s32.totalorder %v45, %v76
    %vm81 = vcmp.eq.s32.totalorder %v46, %v76
    %vm82 = vcmp.eq.s32.totalorder %v47, %v76
    %vm83 = vcmp.eq.s32.totalorder %v48, %v76
    %vm84 = vcmp.eq.s32.totalorder %v49, %v76
    %vm85 = vcmp.eq.s32.totalorder %v50, %v76
    %vm86 = vcmp.eq.s32.totalorder %v51, %v76
    %vm87 = vcmp.eq.s32.totalorder %v52, %v76
    %vm88 = vcmp.eq.s32.totalorder %v53, %v76
    %vm89 = vcmp.eq.s32.totalorder %v54, %v76
    %vm90 = vcmp.eq.s32.totalorder %v55, %v76
    %vm91 = vcmp.eq.s32.totalorder %v56, %v76
    %vm92 = vcmp.eq.s32.totalorder %v57, %v76
    %vm93 = vcmp.eq.s32.totalorder %v58, %v76
    %vm94 = vcmp.eq.s32.totalorder %v59, %v76
    %vm95 = vcmp.eq.s32.totalorder %v60, %v76
    %vm96 = vcmp.eq.s32.totalorder %v61, %v76
    %vm97 = vcmp.eq.s32.totalorder %v62, %v76
    %vm98 = vcmp.eq.s32.totalorder %v63, %v76
    %vm99 = vcmp.eq.s32.totalorder %v64, %v76
    %vm100 = vcmp.eq.s32.totalorder %v65, %v76
    %vm101 = vcmp.eq.s32.totalorder %v66, %v76
    %vm102 = vcmp.eq.s32.totalorder %v67, %v76
    %vm103 = vcmp.eq.s32.totalorder %v68, %v76
    %vm104 = vcmp.eq.s32.totalorder %v69, %v76
    %vm105 = vcmp.eq.s32.totalorder %v70, %v76
    %vm106 = vcmp.eq.s32.totalorder %v71, %v76
    %vm107 = vcmp.eq.s32.totalorder %v72, %v76
    %vm108 = vcmp.eq.s32.totalorder %v73, %v76
    %s109 = sld [smem:[#allocation3]]
    %v110 = vstv %s109
    %v111 = vsel %vm77, %v110, 0.0
    %v112 = vsel %vm78, %v110, 0.0
    %v113 = vsel %vm79, %v110, 0.0
    %v114 = vsel %vm80, %v110, 0.0
    %v115 = vsel %vm81, %v110, 0.0
    %v116 = vsel %vm82, %v110, 0.0
    %v117 = vsel %vm83, %v110, 0.0
    %v118 = vsel %vm84, %v110, 0.0
    %v119 = vsel %vm85, %v110, 0.0
    %v120 = vsel %vm86, %v110, 0.0
    %v121 = vsel %vm87, %v110, 0.0
    %v122 = vsel %vm88, %v110, 0.0
    %v123 = vsel %vm89, %v110, 0.0
    %v124 = vsel %vm90, %v110, 0.0
    %v125 = vsel %vm91, %v110, 0.0
    %v126 = vsel %vm92, %v110, 0.0
    %v127 = vsel %vm93, %v110, 0.0
    %v128 = vsel %vm94, %v110, 0.0
    %v129 = vsel %vm95, %v110, 0.0
    %v130 = vsel %vm96, %v110, 0.0
    %v131 = vsel %vm97, %v110, 0.0
    %v132 = vsel %vm98, %v110, 0.0
    %v133 = vsel %vm99, %v110, 0.0
    %v134 = vsel %vm100, %v110, 0.0
    %v135 = vsel %vm101, %v110, 0.0
    %v136 = vsel %vm102, %v110, 0.0
    %v137 = vsel %vm103, %v110, 0.0
    %v138 = vsel %vm104, %v110, 0.0
    %v139 = vsel %vm105, %v110, 0.0
    %v140 = vsel %vm106, %v110, 0.0
    %v141 = vsel %vm107, %v110, 0.0
    %v142 = vsel %vm108, %v110, 0.0
    %v143 = vadd.f32 %v111, 0.0
    %v144 = vadd.f32 %v112, 0.0
    %v145 = vadd.f32 %v113, 0.0
    %v146 = vadd.f32 %v114, 0.0
    %v147 = vadd.f32 %v115, 0.0
    %v148 = vadd.f32 %v116, 0.0
    %v149 = vadd.f32 %v117, 0.0
    %v150 = vadd.f32 %v118, 0.0
    %v151 = vadd.f32 %v119, 0.0
    %v152 = vadd.f32 %v120, 0.0
    %v153 = vadd.f32 %v121, 0.0
    %v154 = vadd.f32 %v122, 0.0
    %v155 = vadd.f32 %v123, 0.0
    %v156 = vadd.f32 %v124, 0.0
    %v157 = vadd.f32 %v125, 0.0
    %v158 = vadd.f32 %v126, 0.0
    %v159 = vadd.f32 %v127, 0.0
    %v160 = vadd.f32 %v128, 0.0
    %v161 = vadd.f32 %v129, 0.0
    %v162 = vadd.f32 %v130, 0.0
    %v163 = vadd.f32 %v131, 0.0
    %v164 = vadd.f32 %v132, 0.0
    %v165 = vadd.f32 %v133, 0.0
    %v166 = vadd.f32 %v134, 0.0
    %v167 = vadd.f32 %v135, 0.0
    %v168 = vadd.f32 %v136, 0.0
    %v169 = vadd.f32 %v137, 0.0
    %v170 = vadd.f32 %v138, 0.0
    %v171 = vadd.f32 %v139, 0.0
    %v172 = vadd.f32 %v140, 0.0
    %v173 = vadd.f32 %v141, 0.0
    %v174 = vadd.f32 %v142, 0.0
    %v175 = vadd.s32 %v76, 1
    %vm176 = vcmp.eq.s32.totalorder %v42, %v175
    %vm177 = vcmp.eq.s32.totalorder %v43, %v175
    %vm178 = vcmp.eq.s32.totalorder %v44, %v175
    %vm179 = vcmp.eq.s32.totalorder %v45, %v175
    %vm180 = vcmp.eq.s32.totalorder %v46, %v175
    %vm181 = vcmp.eq.s32.totalorder %v47, %v175
    %vm182 = vcmp.eq.s32.totalorder %v48, %v175
    %vm183 = vcmp.eq.s32.totalorder %v49, %v175
    %vm184 = vcmp.eq.s32.totalorder %v50, %v175
    %vm185 = vcmp.eq.s32.totalorder %v51, %v175
    %vm186 = vcmp.eq.s32.totalorder %v52, %v175
    %vm187 = vcmp.eq.s32.totalorder %v53, %v175
    %vm188 = vcmp.eq.s32.totalorder %v54, %v175
    %vm189 = vcmp.eq.s32.totalorder %v55, %v175
    %vm190 = vcmp.eq.s32.totalorder %v56, %v175
    %vm191 = vcmp.eq.s32.totalorder %v57, %v175
    %vm192 = vcmp.eq.s32.totalorder %v58, %v175
    %vm193 = vcmp.eq.s32.totalorder %v59, %v175
    %vm194 = vcmp.eq.s32.totalorder %v60, %v175
    %vm195 = vcmp.eq.s32.totalorder %v61, %v175
    %vm196 = vcmp.eq.s32.totalorder %v62, %v175
    %vm197 = vcmp.eq.s32.totalorder %v63, %v175
    %vm198 = vcmp.eq.s32.totalorder %v64, %v175
    %vm199 = vcmp.eq.s32.totalorder %v65, %v175
    %vm200 = vcmp.eq.s32.totalorder %v66, %v175
    %vm201 = vcmp.eq.s32.totalorder %v67, %v175
    %vm202 = vcmp.eq.s32.totalorder %v68, %v175
    %vm203 = vcmp.eq.s32.totalorder %v69, %v175
    %vm204 = vcmp.eq.s32.totalorder %v70, %v175
    %vm205 = vcmp.eq.s32.totalorder %v71, %v175
    %vm206 = vcmp.eq.s32.totalorder %v72, %v175
    %vm207 = vcmp.eq.s32.totalorder %v73, %v175
    %s208 = sld [smem:[#allocation3 + $0x1]]
    %v209 = vstv %s208
    %v210 = vsel %vm176, %v209, 0.0
    %v211 = vsel %vm177, %v209, 0.0
    %v212 = vsel %vm178, %v209, 0.0
    %v213 = vsel %vm179, %v209, 0.0
    %v214 = vsel %vm180, %v209, 0.0
    %v215 = vsel %vm181, %v209, 0.0
    %v216 = vsel %vm182, %v209, 0.0
    %v217 = vsel %vm183, %v209, 0.0
    %v218 = vsel %vm184, %v209, 0.0
    %v219 = vsel %vm185, %v209, 0.0
    %v220 = vsel %vm186, %v209, 0.0
    %v221 = vsel %vm187, %v209, 0.0
    %v222 = vsel %vm188, %v209, 0.0
    %v223 = vsel %vm189, %v209, 0.0
    %v224 = vsel %vm190, %v209, 0.0
    %v225 = vsel %vm191, %v209, 0.0
    %v226 = vsel %vm192, %v209, 0.0
    %v227 = vsel %vm193, %v209, 0.0
    %v228 = vsel %vm194, %v209, 0.0
    %v229 = vsel %vm195, %v209, 0.0
    %v230 = vsel %vm196, %v209, 0.0
    %v231 = vsel %vm197, %v209, 0.0
    %v232 = vsel %vm198, %v209, 0.0
    %v233 = vsel %vm199, %v209, 0.0
    %v234 = vsel %vm200, %v209, 0.0
    %v235 = vsel %vm201, %v209, 0.0
    %v236 = vsel %vm202, %v209, 0.0
    %v237 = vsel %vm203, %v209, 0.0
    %v238 = vsel %vm204, %v209, 0.0
    %v239 = vsel %vm205, %v209, 0.0
    %v240 = vsel %vm206, %v209, 0.0
    %v241 = vsel %vm207, %v209, 0.0
    %v242 = vadd.f32 %v143, %v210
    %v243 = vadd.f32 %v144, %v211
    %v244 = vadd.f32 %v145, %v212
    %v245 = vadd.f32 %v146, %v213
    %v246 = vadd.f32 %v147, %v214
    %v247 = vadd.f32 %v148, %v215
    %v248 = vadd.f32 %v149, %v216
    %v249 = vadd.f32 %v150, %v217
    %v250 = vadd.f32 %v151, %v218
    %v251 = vadd.f32 %v152, %v219
    %v252 = vadd.f32 %v153, %v220
    %v253 = vadd.f32 %v154, %v221
    %v254 = vadd.f32 %v155, %v222
    %v255 = vadd.f32 %v156, %v223
    %v256 = vadd.f32 %v157, %v224
    %v257 = vadd.f32 %v158, %v225
    %v258 = vadd.f32 %v159, %v226
    %v259 = vadd.f32 %v160, %v227
    %v260 = vadd.f32 %v161, %v228
    %v261 = vadd.f32 %v162, %v229
    %v262 = vadd.f32 %v163, %v230
    %v263 = vadd.f32 %v164, %v231
    %v264 = vadd.f32 %v165, %v232
    %v265 = vadd.f32 %v166, %v233
    %v266 = vadd.f32 %v167, %v234
    %v267 = vadd.f32 %v168, %v235
    %v268 = vadd.f32 %v169, %v236
    %v269 = vadd.f32 %v170, %v237
    %v270 = vadd.f32 %v171, %v238
    %v271 = vadd.f32 %v172, %v239
    %v272 = vadd.f32 %v173, %v240
    %v273 = vadd.f32 %v174, %v241
    %v274 = vld [vmem:[#allocation7] sm:$0xff]
    %v275 = vld [vmem:[#allocation7 + $0x8] sm:$0xff]
    %s276 = sld [smem:[#allocation2]]
    %v277 = vstv %s276
    %278 = vmatprep.subr.mxu0 0.0
    %v279 = vand.u32 %v257, 4294901760
    %280 = vmatpush1.msra.mxu0 %v279
    %281 = vmatprep.subr.mxu0 0.0
    %v282 = vand.u32 %v256, 4294901760
    %283 = vmatpush1.msra.mxu0 %v282
    %284 = vmatprep.subr.mxu0 0.0
    %v285 = vand.u32 %v255, 4294901760
    %286 = vmatpush1.msra.mxu0 %v285
    %287 = vmatprep.subr.mxu0 0.0
    %v288 = vand.u32 %v254, 4294901760
    %289 = vmatpush1.msra.mxu0 %v288
    %290 = vmatprep.subr.mxu0 0.0
    %v291 = vand.u32 %v253, 4294901760
    %292 = vmatpush1.msra.mxu0 %v291
    %293 = vmatprep.subr.mxu0 0.0
    %v294 = vand.u32 %v252, 4294901760
    %295 = vmatpush1.msra.mxu0 %v294
    %296 = vmatprep.subr.mxu0 0.0
    %v297 = vand.u32 %v251, 4294901760
    %298 = vmatpush1.msra.mxu0 %v297
    %299 = vmatprep.subr.mxu0 0.0
    %v300 = vand.u32 %v250, 4294901760
    %301 = vmatpush1.msra.mxu0 %v300
    %302 = vmatprep.subr.mxu0 0.0
    %v303 = vand.u32 %v249, 4294901760
    %304 = vmatpush1.msra.mxu0 %v303
    %305 = vmatprep.subr.mxu0 0.0
    %v306 = vand.u32 %v248, 4294901760
    %307 = vmatpush1.msra.mxu0 %v306
    %308 = vmatprep.subr.mxu0 0.0
    %v309 = vand.u32 %v247, 4294901760
    %310 = vmatpush1.msra.mxu0 %v309
    %311 = vmatprep.subr.mxu0 0.0
    %v312 = vand.u32 %v246, 4294901760
    %313 = vmatpush1.msra.mxu0 %v312
    %314 = vmatprep.subr.mxu0 0.0
    %v315 = vand.u32 %v245, 4294901760
    %316 = vmatpush1.msra.mxu0 %v315
    %317 = vmatprep.subr.mxu0 0.0
    %v318 = vand.u32 %v244, 4294901760
    %319 = vmatpush1.msra.mxu0 %v318
    %320 = vmatprep.subr.mxu0 0.0
    %v321 = vand.u32 %v243, 4294901760
    %322 = vmatpush1.msra.mxu0 %v321
    %323 = vmatprep.subr.mxu0 0.0
    %v324 = vand.u32 %v242, 4294901760
    %325 = vmatpush1.msra.mxu0 %v324
    %326 = vmatprep.subr.mxu0 0.0
    %v327 = vand.u32 %v273, 4294901760
    %328 = vmatpush2.msra.mxu0 %v327
    %329 = vmatprep.subr.mxu0 0.0
    %v330 = vand.u32 %v272, 4294901760
    %331 = vmatpush2.msra.mxu0 %v330
    %332 = vmatprep.subr.mxu0 0.0
    %v333 = vand.u32 %v271, 4294901760
    %334 = vmatpush2.msra.mxu0 %v333
    %335 = vmatprep.subr.mxu0 0.0
    %v336 = vand.u32 %v270, 4294901760
    %337 = vmatpush2.msra.mxu0 %v336
    %338 = vmatprep.subr.mxu0 0.0
    %v339 = vand.u32 %v269, 4294901760
    %340 = vmatpush2.msra.mxu0 %v339
    %341 = vmatprep.subr.mxu0 0.0
    %v342 = vand.u32 %v268, 4294901760
    %343 = vmatpush2.msra.mxu0 %v342
    %344 = vmatprep.subr.mxu0 0.0
    %v345 = vand.u32 %v267, 4294901760
    %346 = vmatpush2.msra.mxu0 %v345
    %347 = vmatprep.subr.mxu0 0.0
    %v348 = vand.u32 %v266, 4294901760
    %349 = vmatpush2.msra.mxu0 %v348
    %350 = vmatprep.subr.mxu0 0.0
    %v351 = vand.u32 %v265, 4294901760
    %352 = vmatpush2.msra.mxu0 %v351
    %353 = vmatprep.subr.mxu0 0.0
    %v354 = vand.u32 %v264, 4294901760
    %355 = vmatpush2.msra.mxu0 %v354
    %356 = vmatprep.subr.mxu0 0.0
    %v357 = vand.u32 %v263, 4294901760
    %358 = vmatpush2.msra.mxu0 %v357
    %359 = vmatprep.subr.mxu0 0.0
    %v360 = vand.u32 %v262, 4294901760
    %361 = vmatpush2.msra.mxu0 %v360
    %362 = vmatprep.subr.mxu0 0.0
    %v363 = vand.u32 %v261, 4294901760
    %364 = vmatpush2.msra.mxu0 %v363
    %365 = vmatprep.subr.mxu0 0.0
    %v366 = vand.u32 %v260, 4294901760
    %367 = vmatpush2.msra.mxu0 %v366
    %368 = vmatprep.subr.mxu0 0.0
    %v369 = vand.u32 %v259, 4294901760
    %370 = vmatpush2.msra.mxu0 %v369
    %371 = vmatprep.subr.mxu0 0.0
    %v372 = vand.u32 %v258, 4294901760
    %373 = vmatpush2.msra.mxu0 %v372
    %v374 = vand.u32 %v275, 4294901760
    %v375 = vsub.f32 %v275, %v374
    %v376 = vand.u32 %v375, 4294901760
    %v377 = vsub.f32 %v375, %v376
    %v378 = vand.u32 %v377, 4294901760
    %379 = vmatprep.mubr.f32.mxu0 %v378
    %v380 = vand.u32 %v274, 4294901760
    %v381 = vsub.f32 %v274, %v380
    %v382 = vand.u32 %v381, 4294901760
    %v383 = vsub.f32 %v381, %v382
    %v384 = vand.u32 %v383, 4294901760
    %385 = vmatmul.mubr.f32.gmra.mxu0 %v384
    %v386 = vpop.f32.mrf.mxu0
    %v387 = vadd.f32 %v277, %v386
    %v388 = vpop.f32.mrf.mxu0
    %389 = vdwg.mxu0
    %390 = vmatprep.subr.mxu0 0.0
    %v391 = vand.u32 %v257, 4294901760
    %v392 = vsub.f32 %v257, %v391
    %v393 = vand.u32 %v392, 4294901760
    %v394 = vsub.f32 %v392, %v393
    %v395 = vand.u32 %v394, 4294901760
    %396 = vmatpush1.msra.mxu0 %v395
    %397 = vmatprep.subr.mxu0 0.0
    %v398 = vand.u32 %v256, 4294901760
    %v399 = vsub.f32 %v256, %v398
    %v400 = vand.u32 %v399, 4294901760
    %v401 = vsub.f32 %v399, %v400
    %v402 = vand.u32 %v401, 4294901760
    %403 = vmatpush1.msra.mxu0 %v402
    %404 = vmatprep.subr.mxu0 0.0
    %v405 = vand.u32 %v255, 4294901760
    %v406 = vsub.f32 %v255, %v405
    %v407 = vand.u32 %v406, 4294901760
    %v408 = vsub.f32 %v406, %v407
    %v409 = vand.u32 %v408, 4294901760
    %410 = vmatpush1.msra.mxu0 %v409
    %411 = vmatprep.subr.mxu0 0.0
    %v412 = vand.u32 %v254, 4294901760
    %v413 = vsub.f32 %v254, %v412
    %v414 = vand.u32 %v413, 4294901760
    %v415 = vsub.f32 %v413, %v414
    %v416 = vand.u32 %v415, 4294901760
    %417 = vmatpush1.msra.mxu0 %v416
    %418 = vmatprep.subr.mxu0 0.0
    %v419 = vand.u32 %v253, 4294901760
    %v420 = vsub.f32 %v253, %v419
    %v421 = vand.u32 %v420, 4294901760
    %v422 = vsub.f32 %v420, %v421
    %v423 = vand.u32 %v422, 4294901760
    %424 = vmatpush1.msra.mxu0 %v423
    %425 = vmatprep.subr.mxu0 0.0
    %v426 = vand.u32 %v252, 4294901760
    %v427 = vsub.f32 %v252, %v426
    %v428 = vand.u32 %v427, 4294901760
    %v429 = vsub.f32 %v427, %v428
    %v430 = vand.u32 %v429, 4294901760
    %431 = vmatpush1.msra.mxu0 %v430
    %432 = vmatprep.subr.mxu0 0.0
    %v433 = vand.u32 %v251, 4294901760
    %v434 = vsub.f32 %v251, %v433
    %v435 = vand.u32 %v434, 4294901760
    %v436 = vsub.f32 %v434, %v435
    %v437 = vand.u32 %v436, 4294901760
    %438 = vmatpush1.msra.mxu0 %v437
    %439 = vmatprep.subr.mxu0 0.0
    %v440 = vand.u32 %v250, 4294901760
    %v441 = vsub.f32 %v250, %v440
    %v442 = vand.u32 %v441, 4294901760
    %v443 = vsub.f32 %v441, %v442
    %v444 = vand.u32 %v443, 4294901760
    %445 = vmatpush1.msra.mxu0 %v444
    %446 = vmatprep.subr.mxu0 0.0
    %v447 = vand.u32 %v249, 4294901760
    %v448 = vsub.f32 %v249, %v447
    %v449 = vand.u32 %v448, 4294901760
    %v450 = vsub.f32 %v448, %v449
    %v451 = vand.u32 %v450, 4294901760
    %452 = vmatpush1.msra.mxu0 %v451
    %453 = vmatprep.subr.mxu0 0.0
    %v454 = vand.u32 %v248, 4294901760
    %v455 = vsub.f32 %v248, %v454
    %v456 = vand.u32 %v455, 4294901760
    %v457 = vsub.f32 %v455, %v456
    %v458 = vand.u32 %v457, 4294901760
    %459 = vmatpush1.msra.mxu0 %v458
    %460 = vmatprep.subr.mxu0 0.0
    %v461 = vand.u32 %v247, 4294901760
    %v462 = vsub.f32 %v247, %v461
    %v463 = vand.u32 %v462, 4294901760
    %v464 = vsub.f32 %v462, %v463
    %v465 = vand.u32 %v464, 4294901760
    %466 = vmatpush1.msra.mxu0 %v465
    %467 = vmatprep.subr.mxu0 0.0
    %v468 = vand.u32 %v246, 4294901760
    %v469 = vsub.f32 %v246, %v468
    %v470 = vand.u32 %v469, 4294901760
    %v471 = vsub.f32 %v469, %v470
    %v472 = vand.u32 %v471, 4294901760
    %473 = vmatpush1.msra.mxu0 %v472
    %474 = vmatprep.subr.mxu0 0.0
    %v475 = vand.u32 %v245, 4294901760
    %v476 = vsub.f32 %v245, %v475
    %v477 = vand.u32 %v476, 4294901760
    %v478 = vsub.f32 %v476, %v477
    %v479 = vand.u32 %v478, 4294901760
    %480 = vmatpush1.msra.mxu0 %v479
    %481 = vmatprep.subr.mxu0 0.0
    %v482 = vand.u32 %v244, 4294901760
    %v483 = vsub.f32 %v244, %v482
    %v484 = vand.u32 %v483, 4294901760
    %v485 = vsub.f32 %v483, %v484
    %v486 = vand.u32 %v485, 4294901760
    %487 = vmatpush1.msra.mxu0 %v486
    %488 = vmatprep.subr.mxu0 0.0
    %v489 = vand.u32 %v243, 4294901760
    %v490 = vsub.f32 %v243, %v489
    %v491 = vand.u32 %v490, 4294901760
    %v492 = vsub.f32 %v490, %v491
    %v493 = vand.u32 %v492, 4294901760
    %494 = vmatpush1.msra.mxu0 %v493
    %495 = vmatprep.subr.mxu0 0.0
    %v496 = vand.u32 %v242, 4294901760
    %v497 = vsub.f32 %v242, %v496
    %v498 = vand.u32 %v497, 4294901760
    %v499 = vsub.f32 %v497, %v498
    %v500 = vand.u32 %v499, 4294901760
    %501 = vmatpush1.msra.mxu0 %v500
    %502 = vmatprep.subr.mxu0 0.0
    %v503 = vand.u32 %v273, 4294901760
    %v504 = vsub.f32 %v273, %v503
    %v505 = vand.u32 %v504, 4294901760
    %v506 = vsub.f32 %v504, %v505
    %v507 = vand.u32 %v506, 4294901760
    %508 = vmatpush2.msra.mxu0 %v507
    %509 = vmatprep.subr.mxu0 0.0
    %v510 = vand.u32 %v272, 4294901760
    %v511 = vsub.f32 %v272, %v510
    %v512 = vand.u32 %v511, 4294901760
    %v513 = vsub.f32 %v511, %v512
    %v514 = vand.u32 %v513, 4294901760
    %515 = vmatpush2.msra.mxu0 %v514
    %516 = vmatprep.subr.mxu0 0.0
    %v517 = vand.u32 %v271, 4294901760
    %v518 = vsub.f32 %v271, %v517
    %v519 = vand.u32 %v518, 4294901760
    %v520 = vsub.f32 %v518, %v519
    %v521 = vand.u32 %v520, 4294901760
    %522 = vmatpush2.msra.mxu0 %v521
    %523 = vmatprep.subr.mxu0 0.0
    %v524 = vand.u32 %v270, 4294901760
    %v525 = vsub.f32 %v270, %v524
    %v526 = vand.u32 %v525, 4294901760
    %v527 = vsub.f32 %v525, %v526
    %v528 = vand.u32 %v527, 4294901760
    %529 = vmatpush2.msra.mxu0 %v528
    %530 = vmatprep.subr.mxu0 0.0
    %v531 = vand.u32 %v269, 4294901760
    %v532 = vsub.f32 %v269, %v531
    %v533 = vand.u32 %v532, 4294901760
    %v534 = vsub.f32 %v532, %v533
    %v535 = vand.u32 %v534, 4294901760
    %536 = vmatpush2.msra.mxu0 %v535
    %537 = vmatprep.subr.mxu0 0.0
    %v538 = vand.u32 %v268, 4294901760
    %v539 = vsub.f32 %v268, %v538
    %v540 = vand.u32 %v539, 4294901760
    %v541 = vsub.f32 %v539, %v540
    %v542 = vand.u32 %v541, 4294901760
    %543 = vmatpush2.msra.mxu0 %v542
    %544 = vmatprep.subr.mxu0 0.0
    %v545 = vand.u32 %v267, 4294901760
    %v546 = vsub.f32 %v267, %v545
    %v547 = vand.u32 %v546, 4294901760
    %v548 = vsub.f32 %v546, %v547
    %v549 = vand.u32 %v548, 4294901760
    %550 = vmatpush2.msra.mxu0 %v549
    %551 = vmatprep.subr.mxu0 0.0
    %v552 = vand.u32 %v266, 4294901760
    %v553 = vsub.f32 %v266, %v552
    %v554 = vand.u32 %v553, 4294901760
    %v555 = vsub.f32 %v553, %v554
    %v556 = vand.u32 %v555, 4294901760
    %557 = vmatpush2.msra.mxu0 %v556
    %558 = vmatprep.subr.mxu0 0.0
    %v559 = vand.u32 %v265, 4294901760
    %v560 = vsub.f32 %v265, %v559
    %v561 = vand.u32 %v560, 4294901760
    %v562 = vsub.f32 %v560, %v561
    %v563 = vand.u32 %v562, 4294901760
    %564 = vmatpush2.msra.mxu0 %v563
    %565 = vmatprep.subr.mxu0 0.0
    %v566 = vand.u32 %v264, 4294901760
    %v567 = vsub.f32 %v264, %v566
    %v568 = vand.u32 %v567, 4294901760
    %v569 = vsub.f32 %v567, %v568
    %v570 = vand.u32 %v569, 4294901760
    %571 = vmatpush2.msra.mxu0 %v570
    %572 = vmatprep.subr.mxu0 0.0
    %v573 = vand.u32 %v263, 4294901760
    %v574 = vsub.f32 %v263, %v573
    %v575 = vand.u32 %v574, 4294901760
    %v576 = vsub.f32 %v574, %v575
    %v577 = vand.u32 %v576, 4294901760
    %578 = vmatpush2.msra.mxu0 %v577
    %579 = vmatprep.subr.mxu0 0.0
    %v580 = vand.u32 %v262, 4294901760
    %v581 = vsub.f32 %v262, %v580
    %v582 = vand.u32 %v581, 4294901760
    %v583 = vsub.f32 %v581, %v582
    %v584 = vand.u32 %v583, 4294901760
    %585 = vmatpush2.msra.mxu0 %v584
    %586 = vmatprep.subr.mxu0 0.0
    %v587 = vand.u32 %v261, 4294901760
    %v588 = vsub.f32 %v261, %v587
    %v589 = vand.u32 %v588, 4294901760
    %v590 = vsub.f32 %v588, %v589
    %v591 = vand.u32 %v590, 4294901760
    %592 = vmatpush2.msra.mxu0 %v591
    %593 = vmatprep.subr.mxu0 0.0
    %v594 = vand.u32 %v260, 4294901760
    %v595 = vsub.f32 %v260, %v594
    %v596 = vand.u32 %v595, 4294901760
    %v597 = vsub.f32 %v595, %v596
    %v598 = vand.u32 %v597, 4294901760
    %599 = vmatpush2.msra.mxu0 %v598
    %600 = vmatprep.subr.mxu0 0.0
    %v601 = vand.u32 %v259, 4294901760
    %v602 = vsub.f32 %v259, %v601
    %v603 = vand.u32 %v602, 4294901760
    %v604 = vsub.f32 %v602, %v603
    %v605 = vand.u32 %v604, 4294901760
    %606 = vmatpush2.msra.mxu0 %v605
    %607 = vmatprep.subr.mxu0 0.0
    %v608 = vand.u32 %v258, 4294901760
    %v609 = vsub.f32 %v258, %v608
    %v610 = vand.u32 %v609, 4294901760
    %v611 = vsub.f32 %v609, %v610
    %v612 = vand.u32 %v611, 4294901760
    %613 = vmatpush2.msra.mxu0 %v612
    %v614 = vand.u32 %v275, 4294901760
    %615 = vmatprep.mubr.f32.mxu0 %v614
    %v616 = vand.u32 %v274, 4294901760
    %617 = vmatmul.mubr.f32.gmra.mxu0 %v616
    %v618 = vpop.f32.mrf.mxu0
    %v619 = vadd.f32 %v387, %v618
    %v620 = vpop.f32.mrf.mxu0
    %621 = vdwg.mxu0
    %622 = vmatprep.subr.mxu0 0.0
    %v623 = vand.u32 %v257, 4294901760
    %v624 = vsub.f32 %v257, %v623
    %625 = vmatpush1.msra.mxu0 %v624
    %626 = vmatprep.subr.mxu0 0.0
    %v627 = vand.u32 %v256, 4294901760
    %v628 = vsub.f32 %v256, %v627
    %629 = vmatpush1.msra.mxu0 %v628
    %630 = vmatprep.subr.mxu0 0.0
    %v631 = vand.u32 %v255, 4294901760
    %v632 = vsub.f32 %v255, %v631
    %633 = vmatpush1.msra.mxu0 %v632
    %634 = vmatprep.subr.mxu0 0.0
    %v635 = vand.u32 %v254, 4294901760
    %v636 = vsub.f32 %v254, %v635
    %637 = vmatpush1.msra.mxu0 %v636
    %638 = vmatprep.subr.mxu0 0.0
    %v639 = vand.u32 %v253, 4294901760
    %v640 = vsub.f32 %v253, %v639
    %641 = vmatpush1.msra.mxu0 %v640
    %642 = vmatprep.subr.mxu0 0.0
    %v643 = vand.u32 %v252, 4294901760
    %v644 = vsub.f32 %v252, %v643
    %645 = vmatpush1.msra.mxu0 %v644
    %646 = vmatprep.subr.mxu0 0.0
    %v647 = vand.u32 %v251, 4294901760
    %v648 = vsub.f32 %v251, %v647
    %649 = vmatpush1.msra.mxu0 %v648
    %650 = vmatprep.subr.mxu0 0.0
    %v651 = vand.u32 %v250, 4294901760
    %v652 = vsub.f32 %v250, %v651
    %653 = vmatpush1.msra.mxu0 %v652
    %654 = vmatprep.subr.mxu0 0.0
    %v655 = vand.u32 %v249, 4294901760
    %v656 = vsub.f32 %v249, %v655
    %657 = vmatpush1.msra.mxu0 %v656
    %658 = vmatprep.subr.mxu0 0.0
    %v659 = vand.u32 %v248, 4294901760
    %v660 = vsub.f32 %v248, %v659
    %661 = vmatpush1.msra.mxu0 %v660
    %662 = vmatprep.subr.mxu0 0.0
    %v663 = vand.u32 %v247, 4294901760
    %v664 = vsub.f32 %v247, %v663
    %665 = vmatpush1.msra.mxu0 %v664
    %666 = vmatprep.subr.mxu0 0.0
    %v667 = vand.u32 %v246, 4294901760
    %v668 = vsub.f32 %v246, %v667
    %669 = vmatpush1.msra.mxu0 %v668
    %670 = vmatprep.subr.mxu0 0.0
    %v671 = vand.u32 %v245, 4294901760
    %v672 = vsub.f32 %v245, %v671
    %673 = vmatpush1.msra.mxu0 %v672
    %674 = vmatprep.subr.mxu0 0.0
    %v675 = vand.u32 %v244, 4294901760
    %v676 = vsub.f32 %v244, %v675
    %677 = vmatpush1.msra.mxu0 %v676
    %678 = vmatprep.subr.mxu0 0.0
    %v679 = vand.u32 %v243, 4294901760
    %v680 = vsub.f32 %v243, %v679
    %681 = vmatpush1.msra.mxu0 %v680
    %682 = vmatprep.subr.mxu0 0.0
    %v683 = vand.u32 %v242, 4294901760
    %v684 = vsub.f32 %v242, %v683
    %685 = vmatpush1.msra.mxu0 %v684
    %686 = vmatprep.subr.mxu0 0.0
    %v687 = vand.u32 %v273, 4294901760
    %v688 = vsub.f32 %v273, %v687
    %689 = vmatpush2.msra.mxu0 %v688
    %690 = vmatprep.subr.mxu0 0.0
    %v691 = vand.u32 %v272, 4294901760
    %v692 = vsub.f32 %v272, %v691
    %693 = vmatpush2.msra.mxu0 %v692
    %694 = vmatprep.subr.mxu0 0.0
    %v695 = vand.u32 %v271, 4294901760
    %v696 = vsub.f32 %v271, %v695
    %697 = vmatpush2.msra.mxu0 %v696
    %698 = vmatprep.subr.mxu0 0.0
    %v699 = vand.u32 %v270, 4294901760
    %v700 = vsub.f32 %v270, %v699
    %701 = vmatpush2.msra.mxu0 %v700
    %702 = vmatprep.subr.mxu0 0.0
    %v703 = vand.u32 %v269, 4294901760
    %v704 = vsub.f32 %v269, %v703
    %705 = vmatpush2.msra.mxu0 %v704
    %706 = vmatprep.subr.mxu0 0.0
    %v707 = vand.u32 %v268, 4294901760
    %v708 = vsub.f32 %v268, %v707
    %709 = vmatpush2.msra.mxu0 %v708
    %710 = vmatprep.subr.mxu0 0.0
    %v711 = vand.u32 %v267, 4294901760
    %v712 = vsub.f32 %v267, %v711
    %713 = vmatpush2.msra.mxu0 %v712
    %714 = vmatprep.subr.mxu0 0.0
    %v715 = vand.u32 %v266, 4294901760
    %v716 = vsub.f32 %v266, %v715
    %717 = vmatpush2.msra.mxu0 %v716
    %718 = vmatprep.subr.mxu0 0.0
    %v719 = vand.u32 %v265, 4294901760
    %v720 = vsub.f32 %v265, %v719
    %721 = vmatpush2.msra.mxu0 %v720
    %722 = vmatprep.subr.mxu0 0.0
    %v723 = vand.u32 %v264, 4294901760
    %v724 = vsub.f32 %v264, %v723
    %725 = vmatpush2.msra.mxu0 %v724
    %726 = vmatprep.subr.mxu0 0.0
    %v727 = vand.u32 %v263, 4294901760
    %v728 = vsub.f32 %v263, %v727
    %729 = vmatpush2.msra.mxu0 %v728
    %730 = vmatprep.subr.mxu0 0.0
    %v731 = vand.u32 %v262, 4294901760
    %v732 = vsub.f32 %v262, %v731
    %733 = vmatpush2.msra.mxu0 %v732
    %734 = vmatprep.subr.mxu0 0.0
    %v735 = vand.u32 %v261, 4294901760
    %v736 = vsub.f32 %v261, %v735
    %737 = vmatpush2.msra.mxu0 %v736
    %738 = vmatprep.subr.mxu0 0.0
    %v739 = vand.u32 %v260, 4294901760
    %v740 = vsub.f32 %v260, %v739
    %741 = vmatpush2.msra.mxu0 %v740
    %742 = vmatprep.subr.mxu0 0.0
    %v743 = vand.u32 %v259, 4294901760
    %v744 = vsub.f32 %v259, %v743
    %745 = vmatpush2.msra.mxu0 %v744
    %746 = vmatprep.subr.mxu0 0.0
    %v747 = vand.u32 %v258, 4294901760
    %v748 = vsub.f32 %v258, %v747
    %749 = vmatpush2.msra.mxu0 %v748
    %v750 = vand.u32 %v275, 4294901760
    %v751 = vsub.f32 %v275, %v750
    %752 = vmatprep.mubr.f32.mxu0 %v751
    %v753 = vand.u32 %v274, 4294901760
    %v754 = vsub.f32 %v274, %v753
    %755 = vmatmul.mubr.f32.gmra.mxu0 %v754
    %v756 = vpop.f32.mrf.mxu0
    %v757 = vadd.f32 %v619, %v756
    %v758 = vpop.f32.mrf.mxu0
    %759 = vdwg.mxu0
    %760 = vmatprep.subr.mxu0 0.0
    %v761 = vand.u32 %v257, 4294901760
    %762 = vmatpush1.msra.mxu0 %v761
    %763 = vmatprep.subr.mxu0 0.0
    %v764 = vand.u32 %v256, 4294901760
    %765 = vmatpush1.msra.mxu0 %v764
    %766 = vmatprep.subr.mxu0 0.0
    %v767 = vand.u32 %v255, 4294901760
    %768 = vmatpush1.msra.mxu0 %v767
    %769 = vmatprep.subr.mxu0 0.0
    %v770 = vand.u32 %v254, 4294901760
    %771 = vmatpush1.msra.mxu0 %v770
    %772 = vmatprep.subr.mxu0 0.0
    %v773 = vand.u32 %v253, 4294901760
    %774 = vmatpush1.msra.mxu0 %v773
    %775 = vmatprep.subr.mxu0 0.0
    %v776 = vand.u32 %v252, 4294901760
    %777 = vmatpush1.msra.mxu0 %v776
    %778 = vmatprep.subr.mxu0 0.0
    %v779 = vand.u32 %v251, 4294901760
    %780 = vmatpush1.msra.mxu0 %v779
    %781 = vmatprep.subr.mxu0 0.0
    %v782 = vand.u32 %v250, 4294901760
    %783 = vmatpush1.msra.mxu0 %v782
    %784 = vmatprep.subr.mxu0 0.0
    %v785 = vand.u32 %v249, 4294901760
    %786 = vmatpush1.msra.mxu0 %v785
    %787 = vmatprep.subr.mxu0 0.0
    %v788 = vand.u32 %v248, 4294901760
    %789 = vmatpush1.msra.mxu0 %v788
    %790 = vmatprep.subr.mxu0 0.0
    %v791 = vand.u32 %v247, 4294901760
    %792 = vmatpush1.msra.mxu0 %v791
    %793 = vmatprep.subr.mxu0 0.0
    %v794 = vand.u32 %v246, 4294901760
    %795 = vmatpush1.msra.mxu0 %v794
    %796 = vmatprep.subr.mxu0 0.0
    %v797 = vand.u32 %v245, 4294901760
    %798 = vmatpush1.msra.mxu0 %v797
    %799 = vmatprep.subr.mxu0 0.0
    %v800 = vand.u32 %v244, 4294901760
    %801 = vmatpush1.msra.mxu0 %v800
    %802 = vmatprep.subr.mxu0 0.0
    %v803 = vand.u32 %v243, 4294901760
    %804 = vmatpush1.msra.mxu0 %v803
    %805 = vmatprep.subr.mxu0 0.0
    %v806 = vand.u32 %v242, 4294901760
    %807 = vmatpush1.msra.mxu0 %v806
    %808 = vmatprep.subr.mxu0 0.0
    %v809 = vand.u32 %v273, 4294901760
    %810 = vmatpush2.msra.mxu0 %v809
    %811 = vmatprep.subr.mxu0 0.0
    %v812 = vand.u32 %v272, 4294901760
    %813 = vmatpush2.msra.mxu0 %v812
    %814 = vmatprep.subr.mxu0 0.0
    %v815 = vand.u32 %v271, 4294901760
    %816 = vmatpush2.msra.mxu0 %v815
    %817 = vmatprep.subr.mxu0 0.0
    %v818 = vand.u32 %v270, 4294901760
    %819 = vmatpush2.msra.mxu0 %v818
    %820 = vmatprep.subr.mxu0 0.0
    %v821 = vand.u32 %v269, 4294901760
    %822 = vmatpush2.msra.mxu0 %v821
    %823 = vmatprep.subr.mxu0 0.0
    %v824 = vand.u32 %v268, 4294901760
    %825 = vmatpush2.msra.mxu0 %v824
    %826 = vmatprep.subr.mxu0 0.0
    %v827 = vand.u32 %v267, 4294901760
    %828 = vmatpush2.msra.mxu0 %v827
    %829 = vmatprep.subr.mxu0 0.0
    %v830 = vand.u32 %v266, 4294901760
    %831 = vmatpush2.msra.mxu0 %v830
    %832 = vmatprep.subr.mxu0 0.0
    %v833 = vand.u32 %v265, 4294901760
    %834 = vmatpush2.msra.mxu0 %v833
    %835 = vmatprep.subr.mxu0 0.0
    %v836 = vand.u32 %v264, 4294901760
    %837 = vmatpush2.msra.mxu0 %v836
    %838 = vmatprep.subr.mxu0 0.0
    %v839 = vand.u32 %v263, 4294901760
    %840 = vmatpush2.msra.mxu0 %v839
    %841 = vmatprep.subr.mxu0 0.0
    %v842 = vand.u32 %v262, 4294901760
    %843 = vmatpush2.msra.mxu0 %v842
    %844 = vmatprep.subr.mxu0 0.0
    %v845 = vand.u32 %v261, 4294901760
    %846 = vmatpush2.msra.mxu0 %v845
    %847 = vmatprep.subr.mxu0 0.0
    %v848 = vand.u32 %v260, 4294901760
    %849 = vmatpush2.msra.mxu0 %v848
    %850 = vmatprep.subr.mxu0 0.0
    %v851 = vand.u32 %v259, 4294901760
    %852 = vmatpush2.msra.mxu0 %v851
    %853 = vmatprep.subr.mxu0 0.0
    %v854 = vand.u32 %v258, 4294901760
    %855 = vmatpush2.msra.mxu0 %v854
    %v856 = vand.u32 %v275, 4294901760
    %v857 = vsub.f32 %v275, %v856
    %v858 = vand.u32 %v857, 4294901760
    %859 = vmatprep.mubr.f32.mxu0 %v858
    %v860 = vand.u32 %v274, 4294901760
    %v861 = vsub.f32 %v274, %v860
    %v862 = vand.u32 %v861, 4294901760
    %863 = vmatmul.mubr.f32.gmra.mxu0 %v862
    %v864 = vpop.f32.mrf.mxu0
    %v865 = vadd.f32 %v757, %v864
    %v866 = vpop.f32.mrf.mxu0
    %867 = vdwg.mxu0
    %868 = vmatprep.subr.mxu0 0.0
    %v869 = vand.u32 %v257, 4294901760
    %v870 = vsub.f32 %v257, %v869
    %v871 = vand.u32 %v870, 4294901760
    %872 = vmatpush1.msra.mxu0 %v871
    %873 = vmatprep.subr.mxu0 0.0
    %v874 = vand.u32 %v256, 4294901760
    %v875 = vsub.f32 %v256, %v874
    %v876 = vand.u32 %v875, 4294901760
    %877 = vmatpush1.msra.mxu0 %v876
    %878 = vmatprep.subr.mxu0 0.0
    %v879 = vand.u32 %v255, 4294901760
    %v880 = vsub.f32 %v255, %v879
    %v881 = vand.u32 %v880, 4294901760
    %882 = vmatpush1.msra.mxu0 %v881
    %883 = vmatprep.subr.mxu0 0.0
    %v884 = vand.u32 %v254, 4294901760
    %v885 = vsub.f32 %v254, %v884
    %v886 = vand.u32 %v885, 4294901760
    %887 = vmatpush1.msra.mxu0 %v886
    %888 = vmatprep.subr.mxu0 0.0
    %v889 = vand.u32 %v253, 4294901760
    %v890 = vsub.f32 %v253, %v889
    %v891 = vand.u32 %v890, 4294901760
    %892 = vmatpush1.msra.mxu0 %v891
    %893 = vmatprep.subr.mxu0 0.0
    %v894 = vand.u32 %v252, 4294901760
    %v895 = vsub.f32 %v252, %v894
    %v896 = vand.u32 %v895, 4294901760
    %897 = vmatpush1.msra.mxu0 %v896
    %898 = vmatprep.subr.mxu0 0.0
    %v899 = vand.u32 %v251, 4294901760
    %v900 = vsub.f32 %v251, %v899
    %v901 = vand.u32 %v900, 4294901760
    %902 = vmatpush1.msra.mxu0 %v901
    %903 = vmatprep.subr.mxu0 0.0
    %v904 = vand.u32 %v250, 4294901760
    %v905 = vsub.f32 %v250, %v904
    %v906 = vand.u32 %v905, 4294901760
    %907 = vmatpush1.msra.mxu0 %v906
    %908 = vmatprep.subr.mxu0 0.0
    %v909 = vand.u32 %v249, 4294901760
    %v910 = vsub.f32 %v249, %v909
    %v911 = vand.u32 %v910, 4294901760
    %912 = vmatpush1.msra.mxu0 %v911
    %913 = vmatprep.subr.mxu0 0.0
    %v914 = vand.u32 %v248, 4294901760
    %v915 = vsub.f32 %v248, %v914
    %v916 = vand.u32 %v915, 4294901760
    %917 = vmatpush1.msra.mxu0 %v916
    %918 = vmatprep.subr.mxu0 0.0
    %v919 = vand.u32 %v247, 4294901760
    %v920 = vsub.f32 %v247, %v919
    %v921 = vand.u32 %v920, 4294901760
    %922 = vmatpush1.msra.mxu0 %v921
    %923 = vmatprep.subr.mxu0 0.0
    %v924 = vand.u32 %v246, 4294901760
    %v925 = vsub.f32 %v246, %v924
    %v926 = vand.u32 %v925, 4294901760
    %927 = vmatpush1.msra.mxu0 %v926
    %928 = vmatprep.subr.mxu0 0.0
    %v929 = vand.u32 %v245, 4294901760
    %v930 = vsub.f32 %v245, %v929
    %v931 = vand.u32 %v930, 4294901760
    %932 = vmatpush1.msra.mxu0 %v931
    %933 = vmatprep.subr.mxu0 0.0
    %v934 = vand.u32 %v244, 4294901760
    %v935 = vsub.f32 %v244, %v934
    %v936 = vand.u32 %v935, 4294901760
    %937 = vmatpush1.msra.mxu0 %v936
    %938 = vmatprep.subr.mxu0 0.0
    %v939 = vand.u32 %v243, 4294901760
    %v940 = vsub.f32 %v243, %v939
    %v941 = vand.u32 %v940, 4294901760
    %942 = vmatpush1.msra.mxu0 %v941
    %943 = vmatprep.subr.mxu0 0.0
    %v944 = vand.u32 %v242, 4294901760
    %v945 = vsub.f32 %v242, %v944
    %v946 = vand.u32 %v945, 4294901760
    %947 = vmatpush1.msra.mxu0 %v946
    %948 = vmatprep.subr.mxu0 0.0
    %v949 = vand.u32 %v273, 4294901760
    %v950 = vsub.f32 %v273, %v949
    %v951 = vand.u32 %v950, 4294901760
    %952 = vmatpush2.msra.mxu0 %v951
    %953 = vmatprep.subr.mxu0 0.0
    %v954 = vand.u32 %v272, 4294901760
    %v955 = vsub.f32 %v272, %v954
    %v956 = vand.u32 %v955, 4294901760
    %957 = vmatpush2.msra.mxu0 %v956
    %958 = vmatprep.subr.mxu0 0.0
    %v959 = vand.u32 %v271, 4294901760
    %v960 = vsub.f32 %v271, %v959
    %v961 = vand.u32 %v960, 4294901760
    %962 = vmatpush2.msra.mxu0 %v961
    %963 = vmatprep.subr.mxu0 0.0
    %v964 = vand.u32 %v270, 4294901760
    %v965 = vsub.f32 %v270, %v964
    %v966 = vand.u32 %v965, 4294901760
    %967 = vmatpush2.msra.mxu0 %v966
    %968 = vmatprep.subr.mxu0 0.0
    %v969 = vand.u32 %v269, 4294901760
    %v970 = vsub.f32 %v269, %v969
    %v971 = vand.u32 %v970, 4294901760
    %972 = vmatpush2.msra.mxu0 %v971
    %973 = vmatprep.subr.mxu0 0.0
    %v974 = vand.u32 %v268, 4294901760
    %v975 = vsub.f32 %v268, %v974
    %v976 = vand.u32 %v975, 4294901760
    %977 = vmatpush2.msra.mxu0 %v976
    %978 = vmatprep.subr.mxu0 0.0
    %v979 = vand.u32 %v267, 4294901760
    %v980 = vsub.f32 %v267, %v979
    %v981 = vand.u32 %v980, 4294901760
    %982 = vmatpush2.msra.mxu0 %v981
    %983 = vmatprep.subr.mxu0 0.0
    %v984 = vand.u32 %v266, 4294901760
    %v985 = vsub.f32 %v266, %v984
    %v986 = vand.u32 %v985, 4294901760
    %987 = vmatpush2.msra.mxu0 %v986
    %988 = vmatprep.subr.mxu0 0.0
    %v989 = vand.u32 %v265, 4294901760
    %v990 = vsub.f32 %v265, %v989
    %v991 = vand.u32 %v990, 4294901760
    %992 = vmatpush2.msra.mxu0 %v991
    %993 = vmatprep.subr.mxu0 0.0
    %v994 = vand.u32 %v264, 4294901760
    %v995 = vsub.f32 %v264, %v994
    %v996 = vand.u32 %v995, 4294901760
    %997 = vmatpush2.msra.mxu0 %v996
    %998 = vmatprep.subr.mxu0 0.0
    %v999 = vand.u32 %v263, 4294901760
    %v1000 = vsub.f32 %v263, %v999
    %v1001 = vand.u32 %v1000, 4294901760
    %1002 = vmatpush2.msra.mxu0 %v1001
    %1003 = vmatprep.subr.mxu0 0.0
    %v1004 = vand.u32 %v262, 4294901760
    %v1005 = vsub.f32 %v262, %v1004
    %v1006 = vand.u32 %v1005, 4294901760
    %1007 = vmatpush2.msra.mxu0 %v1006
    %1008 = vmatprep.subr.mxu0 0.0
    %v1009 = vand.u32 %v261, 4294901760
    %v1010 = vsub.f32 %v261, %v1009
    %v1011 = vand.u32 %v1010, 4294901760
    %1012 = vmatpush2.msra.mxu0 %v1011
    %1013 = vmatprep.subr.mxu0 0.0
    %v1014 = vand.u32 %v260, 4294901760
    %v1015 = vsub.f32 %v260, %v1014
    %v1016 = vand.u32 %v1015, 4294901760
    %1017 = vmatpush2.msra.mxu0 %v1016
    %1018 = vmatprep.subr.mxu0 0.0
    %v1019 = vand.u32 %v259, 4294901760
    %v1020 = vsub.f32 %v259, %v1019
    %v1021 = vand.u32 %v1020, 4294901760
    %1022 = vmatpush2.msra.mxu0 %v1021
    %1023 = vmatprep.subr.mxu0 0.0
    %v1024 = vand.u32 %v258, 4294901760
    %v1025 = vsub.f32 %v258, %v1024
    %v1026 = vand.u32 %v1025, 4294901760
    %1027 = vmatpush2.msra.mxu0 %v1026
    %v1028 = vand.u32 %v275, 4294901760
    %1029 = vmatprep.mubr.f32.mxu0 %v1028
    %v1030 = vand.u32 %v274, 4294901760
    %1031 = vmatmul.mubr.f32.gmra.mxu0 %v1030
    %v1032 = vpop.f32.mrf.mxu0
    %v1033 = vadd.f32 %v865, %v1032
    %v1034 = vpop.f32.mrf.mxu0
    %1035 = vdwg.mxu0
    %1036 = vmatprep.subr.mxu0 0.0
    %v1037 = vand.u32 %v257, 4294901760
    %1038 = vmatpush1.msra.mxu0 %v1037
    %1039 = vmatprep.subr.mxu0 0.0
    %v1040 = vand.u32 %v256, 4294901760
    %1041 = vmatpush1.msra.mxu0 %v1040
    %1042 = vmatprep.subr.mxu0 0.0
    %v1043 = vand.u32 %v255, 4294901760
    %1044 = vmatpush1.msra.mxu0 %v1043
    %1045 = vmatprep.subr.mxu0 0.0
    %v1046 = vand.u32 %v254, 4294901760
    %1047 = vmatpush1.msra.mxu0 %v1046
    %1048 = vmatprep.subr.mxu0 0.0
    %v1049 = vand.u32 %v253, 4294901760
    %1050 = vmatpush1.msra.mxu0 %v1049
    %1051 = vmatprep.subr.mxu0 0.0
    %v1052 = vand.u32 %v252, 4294901760
    %1053 = vmatpush1.msra.mxu0 %v1052
    %1054 = vmatprep.subr.mxu0 0.0
    %v1055 = vand.u32 %v251, 4294901760
    %1056 = vmatpush1.msra.mxu0 %v1055
    %1057 = vmatprep.subr.mxu0 0.0
    %v1058 = vand.u32 %v250, 4294901760
    %1059 = vmatpush1.msra.mxu0 %v1058
    %1060 = vmatprep.subr.mxu0 0.0
    %v1061 = vand.u32 %v249, 4294901760
    %1062 = vmatpush1.msra.mxu0 %v1061
    %1063 = vmatprep.subr.mxu0 0.0
    %v1064 = vand.u32 %v248, 4294901760
    %1065 = vmatpush1.msra.mxu0 %v1064
    %1066 = vmatprep.subr.mxu0 0.0
    %v1067 = vand.u32 %v247, 4294901760
    %1068 = vmatpush1.msra.mxu0 %v1067
    %1069 = vmatprep.subr.mxu0 0.0
    %v1070 = vand.u32 %v246, 4294901760
    %1071 = vmatpush1.msra.mxu0 %v1070
    %1072 = vmatprep.subr.mxu0 0.0
    %v1073 = vand.u32 %v245, 4294901760
    %1074 = vmatpush1.msra.mxu0 %v1073
    %1075 = vmatprep.subr.mxu0 0.0
    %v1076 = vand.u32 %v244, 4294901760
    %1077 = vmatpush1.msra.mxu0 %v1076
    %1078 = vmatprep.subr.mxu0 0.0
    %v1079 = vand.u32 %v243, 4294901760
    %1080 = vmatpush1.msra.mxu0 %v1079
    %1081 = vmatprep.subr.mxu0 0.0
    %v1082 = vand.u32 %v242, 4294901760
    %1083 = vmatpush1.msra.mxu0 %v1082
    %1084 = vmatprep.subr.mxu0 0.0
    %v1085 = vand.u32 %v273, 4294901760
    %1086 = vmatpush2.msra.mxu0 %v1085
    %1087 = vmatprep.subr.mxu0 0.0
    %v1088 = vand.u32 %v272, 4294901760
    %1089 = vmatpush2.msra.mxu0 %v1088
    %1090 = vmatprep.subr.mxu0 0.0
    %v1091 = vand.u32 %v271, 4294901760
    %1092 = vmatpush2.msra.mxu0 %v1091
    %1093 = vmatprep.subr.mxu0 0.0
    %v1094 = vand.u32 %v270, 4294901760
    %1095 = vmatpush2.msra.mxu0 %v1094
    %1096 = vmatprep.subr.mxu0 0.0
    %v1097 = vand.u32 %v269, 4294901760
    %1098 = vmatpush2.msra.mxu0 %v1097
    %1099 = vmatprep.subr.mxu0 0.0
    %v1100 = vand.u32 %v268, 4294901760
    %1101 = vmatpush2.msra.mxu0 %v1100
    %1102 = vmatprep.subr.mxu0 0.0
    %v1103 = vand.u32 %v267, 4294901760
    %1104 = vmatpush2.msra.mxu0 %v1103
    %1105 = vmatprep.subr.mxu0 0.0
    %v1106 = vand.u32 %v266, 4294901760
    %1107 = vmatpush2.msra.mxu0 %v1106
    %1108 = vmatprep.subr.mxu0 0.0
    %v1109 = vand.u32 %v265, 4294901760
    %1110 = vmatpush2.msra.mxu0 %v1109
    %1111 = vmatprep.subr.mxu0 0.0
    %v1112 = vand.u32 %v264, 4294901760
    %1113 = vmatpush2.msra.mxu0 %v1112
    %1114 = vmatprep.subr.mxu0 0.0
    %v1115 = vand.u32 %v263, 4294901760
    %1116 = vmatpush2.msra.mxu0 %v1115
    %1117 = vmatprep.subr.mxu0 0.0
    %v1118 = vand.u32 %v262, 4294901760
    %1119 = vmatpush2.msra.mxu0 %v1118
    %1120 = vmatprep.subr.mxu0 0.0
    %v1121 = vand.u32 %v261, 4294901760
    %1122 = vmatpush2.msra.mxu0 %v1121
    %1123 = vmatprep.subr.mxu0 0.0
    %v1124 = vand.u32 %v260, 4294901760
    %1125 = vmatpush2.msra.mxu0 %v1124
    %1126 = vmatprep.subr.mxu0 0.0
    %v1127 = vand.u32 %v259, 4294901760
    %1128 = vmatpush2.msra.mxu0 %v1127
    %1129 = vmatprep.subr.mxu0 0.0
    %v1130 = vand.u32 %v258, 4294901760
    %1131 = vmatpush2.msra.mxu0 %v1130
    %v1132 = vand.u32 %v275, 4294901760
    %1133 = vmatprep.mubr.f32.mxu0 %v1132
    %v1134 = vand.u32 %v274, 4294901760
    %1135 = vmatmul.mubr.f32.gmra.mxu0 %v1134
    %v1136 = vpop.f32.mrf.mxu0
    %v1137 = vadd.f32 %v1033, %v1136
    %v1138 = vpop.f32.mrf.mxu0
    %1139 = vdwg.mxu0
    %1140 = vst [vmem:[#allocation8] sm:$0xff] %v1137
    // Predicated region
    $region22: #{tpu_custom_call.1} parent=1 // pred_check
      _
    $region23: #{tpu_custom_call.1} parent=1 // pred_check_branch
      %1142 = sbr.rel (0) target = $region25
    $region24: #{tpu_custom_call.1} parent=1 // pred_region
      %s1144 = ssub.s32 128, 128
      %1145 = vsyncadd [#allocation5], %s1144
      %s1147 = sshll.u32 [#allocation8], 4
      %s1148 = int_to_ptr.vmem [resolvable:$true] %s1147
      %1150 = dma.vmem_to_hbm [thread:$0]  %s1148, 128, %s3, [#allocation5]
    $region25: #{tpu_custom_call.1} parent=1 // pred_fallthru
      _
    // Predicated region
    $region26: #{tpu_custom_call.1} parent=1 // pred_check
      _
    $region27: #{tpu_custom_call.1} parent=1 // pred_check_branch
      %1152 = sbr.rel (0) target = $region29
    $region28: #{tpu_custom_call.1} parent=1 // pred_region
      %1153 = dma.done [#allocation5], 128
    $region29: #{tpu_custom_call.1} parent=1 // pred_fallthru
      _
    %1154 = vsyncpa [#allocation4], 1
    %1155 = vsyncpa [#allocation5], 1
    %1156 = vsyncpa [#allocation6], 1

</llo_original>
